<compile_context>
chip_gen: v7x
topology: tpu7x:2x2x1
jax: 0.10.0
libtpu: 0.0.40
codegen_flags: <defaults>
</compile_context>

<pallas_src>
import math

import jax
import jax.numpy as jnp
import numpy as np
from jax.experimental import pallas as pl
from jax.experimental.pallas import tpu as pltpu


# ------------------------------- kernels -------------------------------------


def nac_gate_kernel(w_hat_ref, m_hat_ref, w_ref):
    """W^T tile = tanh(W_hat^T) * sigmoid(M_hat^T) (sigmoid via tanh identity)."""
    wh = w_hat_ref[...].astype(jnp.float32)
    mh = m_hat_ref[...].astype(jnp.float32)
    # sigmoid(x) == 0.5 * (1 + tanh(0.5 * x)): 2 EUP ops/element instead of 3
    # (tanh + exp + reciprocal); the extra mul/add go to the VPU for free.
    gate = 0.5 * (1.0 + jnp.tanh(0.5 * mh))
    w_ref[...] = (jnp.tanh(wh) * gate).astype(w_ref.dtype)


def nac_matmul_single_k_kernel(x_ref, wt_ref, out_ref):
    """out tile = x tile @ W^T slab; whole padded in_dim as one contraction."""
    out_ref[...] = jnp.dot(
        x_ref[...], wt_ref[...], preferred_element_type=jnp.float32
    ).astype(out_ref.dtype)


def nac_matmul_k_tiled_kernel(x_ref, wt_ref, out_ref, acc_ref):
    """Fallback for very large in_dim: K-tiled matmul with f32 accumulator."""

    @pl.when(pl.program_id(2) == 0)
    def _():
        acc_ref[...] = jnp.zeros_like(acc_ref)

    acc_ref[...] += jnp.dot(
        x_ref[...], wt_ref[...], preferred_element_type=jnp.float32
    )

    @pl.when(pl.program_id(2) == pl.num_programs(2) - 1)
    def _():
        out_ref[...] = acc_ref[...].astype(out_ref.dtype)


# ------------------------------- helpers --------------------------------------


def _cdiv(a, b):
    return -(-a // b)


def _round_up(x, m):
    return _cdiv(x, m) * m


def _divisor_tile(dim, cap, step):
    """Largest multiple of `step`, <= cap, that divides `dim` (dim % step == 0)."""
    t = max(step, min(dim, cap) // step * step)
    while dim % t:
        t -= step
    return t


def _vmem_budget_bytes():
    """Generation-aware VMEM budget: half of physical capacity."""
    try:
        cap = int(pltpu.get_tpu_info().vmem_capacity_bytes)
    except Exception:  # conservative fallback (safe on v5e/v6e/v7x)
        cap = 64 * 1024 * 1024
    return max(16 * 1024 * 1024, cap // 2)


def _matmul_config(batch, out_dim, in_dim, ims, osz, budget):
    """Pick tiles first, then pad arrays up to multiples of those tiles."""
    # bf16 packs 2 rows / sublane -> keep tm a multiple of 16 (32 for 1-byte).
    mstep = max(8, 32 // ims)

    pk_full = _round_up(in_dim, 128)
    pn0 = _round_up(out_dim, 128)

    # out_dim tile: single slab when it fits, else ~even 512-capped split.
    if pn0 <= 512:
        tn = pn0
    else:
        tn = 512
    pn = _round_up(out_dim, tn)

    # batch tile: cap 512, split ~evenly to avoid huge zero-padding.
    nt_m = _cdiv(batch, 512)
    tm = min(512, _round_up(_cdiv(batch, nt_m), mstep))

    # ---- Path 1: single contraction tile (tk == padded in_dim), resident W^T
    # slab.  VMEM (worst case, double-buffered): x tile + W^T slab + out tile.
    def single_k_vmem(tm_):
        return (2 * tm_ * pk_full + 2 * pk_full * tn) * ims + 2 * tm_ * tn * osz

    t = tm
    while t > mstep and single_k_vmem(t) > budget:
        t = max(mstep, (t // 2) // mstep * mstep)
    if single_k_vmem(t) <= budget:
        tm = t
        pb = _round_up(batch, tm)
        # v7x has 2 TensorCores: make sure the "parallel" grid has >= 2 steps
        # when the batch is large enough to split.
        if (pb // tm) * (pn // tn) < 2 and batch > mstep:
            tm_half = max(mstep, _round_up(_cdiv(batch, 2), mstep))
            if tm_half < tm:
                tm = tm_half
                pb = _round_up(batch, tm)
        return dict(path="single_k", tm=tm, tn=tn, tk=pk_full,
                    pb=pb, pn=pn, pk=pk_full)

    # ---- Path 2: K-tiled with f32 VMEM accumulator (very large in_dim).
    tm = min(tm, 512)
    tn2 = min(tn, 512)
    tk = 2048

    def tiled_vmem(tm_, tn_, tk_):
        return ((2 * tm_ * tk_ + 2 * tk_ * tn_) * ims
                + 2 * tm_ * tn_ * osz + tm_ * tn_ * 4)

    while tk > 512 and tiled_vmem(tm, tn2, tk) > budget:
        tk //= 2
    while tm > max(mstep, 128) and tiled_vmem(tm, tn2, tk) > budget:
        tm = max(mstep, (tm // 2) // mstep * mstep)
    while tn2 > 128 and tiled_vmem(tm, tn2, tk) > budget:
        tn2 = max(128, (tn2 // 2) // 128 * 128)

    return dict(path="k_tiled", tm=tm, tn=tn2, tk=tk,
                pb=_round_up(batch, tm),
                pn=_round_up(out_dim, tn2),
                pk=_round_up(in_dim, tk))


# ------------------------------- wrappers -------------------------------------


def _nac_gate(w_hat_t, m_hat_t, compute_dtype, vmem_limit):
    """Elementwise gate on the transposed, padded (pk, pn) parameters."""
    pk, pn = w_hat_t.shape
    gr = _divisor_tile(pk, 512, 8)
    gc = _divisor_tile(pn, 1024, 128)
    cost = pl.CostEstimate(
        flops=4 * pk * pn,
        transcendentals=2 * pk * pn,
        bytes_accessed=2 * pk * pn * w_hat_t.dtype.itemsize
        + pk * pn * np.dtype(compute_dtype).itemsize,
    )
    return pl.pallas_call(
        nac_gate_kernel,
        out_shape=jax.ShapeDtypeStruct((pk, pn), compute_dtype),
        grid_spec=pltpu.PrefetchScalarGridSpec(
            num_scalar_prefetch=0,
            grid=(pk // gr, pn // gc),
            in_specs=[
                pl.BlockSpec((gr, gc), lambda r, c: (r, c)),
                pl.BlockSpec((gr, gc), lambda r, c: (r, c)),
            ],
            out_specs=pl.BlockSpec((gr, gc), lambda r, c: (r, c)),
        ),
        compiler_params=pltpu.CompilerParams(
            dimension_semantics=("parallel", "parallel"),
            vmem_limit_bytes=vmem_limit,
        ),
        cost_estimate=cost,
    )(w_hat_t, m_hat_t)


def _nac_matmul_single_k(x, wt, *, tm, tn, out_dtype, vmem_limit):
    """x (pb, pk) @ W^T (pk, pn); no reduction axis, W^T slab VMEM-resident."""
    pb, pk = x.shape
    pk_w, pn = wt.shape
    assert pk_w == pk
    cost = pl.CostEstimate(
        flops=2 * pb * pn * pk,
        transcendentals=0,
        bytes_accessed=(pn // tn) * pb * pk * x.dtype.itemsize
        + pk * pn * wt.dtype.itemsize
        + pb * pn * np.dtype(out_dtype).itemsize,
    )
    return pl.pallas_call(
        nac_matmul_single_k_kernel,
        out_shape=jax.ShapeDtypeStruct((pb, pn), out_dtype),
        grid_spec=pltpu.PrefetchScalarGridSpec(
            num_scalar_prefetch=0,
            # out_dim tiles OUTER, batch tiles INNER: the (pk, tn) W^T slab's
            # block index is constant over the whole inner batch loop, so
            # Pallas fetches it once per slab -> total W HBM traffic == |W|.
            grid=(pn // tn, pb // tm),
            in_specs=[
                pl.BlockSpec((tm, pk), lambda j, i: (i, 0)),
                pl.BlockSpec((pk, tn), lambda j, i: (0, j)),
            ],
            out_specs=pl.BlockSpec((tm, tn), lambda j, i: (i, j)),
        ),
        compiler_params=pltpu.CompilerParams(
            dimension_semantics=("parallel", "parallel"),
            vmem_limit_bytes=vmem_limit,
        ),
        cost_estimate=cost,
    )(x, wt)


def _nac_matmul_k_tiled(x, wt, *, tm, tn, tk, out_dtype, vmem_limit):
    """Large-in_dim fallback: (i, j, k) grid, resident f32 accumulator."""
    pb, pk = x.shape
    pk_w, pn = wt.shape
    assert pk_w == pk
    cost = pl.CostEstimate(
        flops=2 * pb * pn * pk,
        transcendentals=0,
        bytes_accessed=(pn // tn) * pb * pk * x.dtype.itemsize
        + (pb // tm) * pk * pn * wt.dtype.itemsize
        + pb * pn * np.dtype(out_dtype).itemsize,
    )
    return pl.pallas_call(
        nac_matmul_k_tiled_kernel,
        out_shape=jax.ShapeDtypeStruct((pb, pn), out_dtype),
        grid_spec=pltpu.PrefetchScalarGridSpec(
            num_scalar_prefetch=0,
            grid=(pb // tm, pn // tn, pk // tk),
            in_specs=[
                pl.BlockSpec((tm, tk), lambda i, j, k: (i, k)),
                pl.BlockSpec((tk, tn), lambda i, j, k: (k, j)),
            ],
            out_specs=pl.BlockSpec((tm, tn), lambda i, j, k: (i, j)),
            scratch_shapes=[pltpu.VMEM((tm, tn), jnp.float32)],
        ),
        compiler_params=pltpu.CompilerParams(
            dimension_semantics=("parallel", "parallel", "arbitrary"),
            vmem_limit_bytes=vmem_limit,
        ),
        cost_estimate=cost,
    )(x, wt)


def nac_forward(x, w_hat, m_hat, *, compute_dtype=jnp.float32):
    """NAC forward: x @ (tanh(W_hat) * sigmoid(M_hat)).T, no bias."""
    batch, in_dim = x.shape
    out_dim, in_dim_w = w_hat.shape
    assert in_dim_w == in_dim and m_hat.shape == w_hat.shape

    ims = np.dtype(compute_dtype).itemsize
    osz = np.dtype(x.dtype).itemsize
    budget = _vmem_budget_bytes()
    cfg = _matmul_config(batch, out_dim, in_dim, ims, osz, budget)
    pb, pn, pk = cfg["pb"], cfg["pn"], cfg["pk"]

    # Pad to the chosen tiles.  Padded weight entries are
    # tanh(0) * sigmoid(0) = 0 and padded x columns are 0 -> no effect on the
    # valid output, which is sliced back to (batch, out_dim).
    xp = jnp.pad(x, ((0, pb - batch), (0, pk - in_dim))).astype(compute_dtype)
    # One-time transpose in the wrapper so the gate emits W^T (pk, pn) and the
    # matmul contracts natively (no in-kernel transpose).
    wht = jnp.pad(w_hat.T, ((0, pk - in_dim), (0, pn - out_dim)))
    mht = jnp.pad(m_hat.T, ((0, pk - in_dim), (0, pn - out_dim)))

    wt = _nac_gate(wht, mht, compute_dtype, budget)   # (pk, pn), gate hoisted

    if cfg["path"] == "single_k":
        outp = _nac_matmul_single_k(
            xp, wt, tm=cfg["tm"], tn=cfg["tn"],
            out_dtype=x.dtype, vmem_limit=budget)
    else:
        outp = _nac_matmul_k_tiled(
            xp, wt, tm=cfg["tm"], tn=cfg["tn"], tk=cfg["tk"],
            out_dtype=x.dtype, vmem_limit=budget)

    return outp[:batch, :out_dim]


def kaiming_uniform(key, shape, a=math.sqrt(5)):
    # Matches torch.nn.init.kaiming_uniform_ for a 2D weight (fan_in = shape[1]).
    fan_in = shape[1]
    gain = math.sqrt(2.0 / (1.0 + a * a))
    bound = gain * math.sqrt(3.0 / fan_in)
    return jax.random.uniform(key, shape, jnp.float32, minval=-bound, maxval=bound)


if __name__ == "__main__":
    in_dim, out_dim, batch = 32, 16, 8

    key = jax.random.PRNGKey(0)
    k_x, k_w, k_m = jax.random.split(key, 3)

    x = jax.random.normal(k_x, (batch, in_dim), dtype=jnp.float32)
    w_hat = kaiming_uniform(k_w, (out_dim, in_dim))
    m_hat = kaiming_uniform(k_m, (out_dim, in_dim))

    # Pure-JAX reference.
    w_ref = jnp.tanh(w_hat) * jax.nn.sigmoid(m_hat)
    ref = x @ w_ref.T

    # f32 path (default): tight tolerance.
    out = jax.block_until_ready(nac_forward(x, w_hat, m_hat))
    assert out.shape == (batch, out_dim)
    assert jnp.allclose(out, ref, atol=1e-5, rtol=1e-5)

    # bf16 matmul operands (MXU-native), f32 accumulation: looser tolerance.
    out_bf16 = jax.block_until_ready(
        nac_forward(x, w_hat, m_hat, compute_dtype=jnp.bfloat16)
    )
    assert out_bf16.shape == (batch, out_dim)
    assert jnp.allclose(out_bf16, ref, atol=2e-2, rtol=2e-2)

    print("KERNEL_OK")
</pallas_src>

<mosaic_0001>
module attributes {stable_mosaic.version = 11 : i64} {
  func.func @nac_gate_kernel(%arg0: i32, %arg1: i32, %arg2: memref<128x128xf32, #tpu.memory_space<vmem>>, %arg3: memref<128x128xf32, #tpu.memory_space<vmem>>, %arg4: memref<128x128xf32, #tpu.memory_space<vmem>>) attributes {dimension_semantics = [#tpu.dimension_semantics<parallel>, #tpu.dimension_semantics<parallel>], iteration_bounds = array<i64: 1, 1>, scalar_prefetch = 0 : i64, scratch_operands = 0 : i64, tpu.core_type = #tpu.core_type<tc>, window_params = [{transform_indices = @transform_0, window_bounds = array<i64: 128, 128>}, {transform_indices = @transform_1, window_bounds = array<i64: 128, 128>}, {transform_indices = @transform_2, window_bounds = array<i64: 128, 128>}]} {
    %c0 = arith.constant 0 : index
    %c0_0 = arith.constant 0 : index
    %0 = vector.load %arg2[%c0, %c0_0] : memref<128x128xf32, #tpu.memory_space<vmem>>, vector<128x128xf32>
    %c0_1 = arith.constant 0 : index
    %c0_2 = arith.constant 0 : index
    %1 = vector.load %arg3[%c0_1, %c0_2] : memref<128x128xf32, #tpu.memory_space<vmem>>, vector<128x128xf32>
    %cst = arith.constant 5.000000e-01 : f32
    %2 = vector.broadcast %cst : f32 to vector<128x128xf32>
    %3 = arith.mulf %2, %1 : vector<128x128xf32>
    %4 = math.tanh %3 : vector<128x128xf32>
    %cst_3 = arith.constant 1.000000e+00 : f32
    %5 = vector.broadcast %cst_3 : f32 to vector<128x128xf32>
    %6 = arith.addf %5, %4 : vector<128x128xf32>
    %cst_4 = arith.constant 5.000000e-01 : f32
    %7 = vector.broadcast %cst_4 : f32 to vector<128x128xf32>
    %8 = arith.mulf %7, %6 : vector<128x128xf32>
    %9 = math.tanh %0 : vector<128x128xf32>
    %10 = arith.mulf %9, %8 : vector<128x128xf32>
    %c0_5 = arith.constant 0 : index
    %c0_6 = arith.constant 0 : index
    %11 = vector.load %arg4[%c0_5, %c0_6] : memref<128x128xf32, #tpu.memory_space<vmem>>, vector<128x128xf32>
    tpu.vector_store %arg4[%c0_5, %c0_6], %10 {strides = array<i32>} : memref<128x128xf32, #tpu.memory_space<vmem>>, vector<128x128xf32>,
    return
  }
  func.func @transform_0(%arg0: i32, %arg1: i32) -> (i32, i32) {
    %c0_i32 = arith.constant 0 : i32
    return %arg0, %arg1 : i32, i32
  }
  func.func @transform_1(%arg0: i32, %arg1: i32) -> (i32, i32) {
    %c0_i32 = arith.constant 0 : i32
    return %arg0, %arg1 : i32, i32
  }
  func.func @transform_2(%arg0: i32, %arg1: i32) -> (i32, i32) {
    %c0_i32 = arith.constant 0 : i32
    return %arg0, %arg1 : i32, i32
  }
}

</mosaic_0001>

<llo_original>
// kernel: tpu_custom_call.1
$region0: #{tpu_custom_call.1}
  #allocation0 [shape = 'u32[]', space=smem, size = 0x4, offset = 0x4, fixed_abs, tag = 'smem constant byte address 0x4 - core index']
  #allocation1 [shape = 'u32[144,128]{1,0:T(1,128)}', space=vmem, size = 0x12000, scoped, tag = 'internal scratch']
  %s0 = inlined_call_operand.hbm [shape: f32[128,128], index: 0, kind: input, shape index: {}]
  %s1 = inlined_call_operand.hbm [shape: f32[128,128], index: 1, kind: input, shape index: {}]
  %s2 = inlined_call_operand.hbm [shape: f32[128,128], index: 2, kind: output, shape index: {}]
  %s3 = sld [smem:[#allocation0]]
  $region26: #{tpu_custom_call.1} parent=0
    _
  %s5 = ssub.s32 1, %s3
  %s6 = scalar_select 0, %s5, %s3
  $region1: #{tpu_custom_call.1} parent=0
    #allocation2 [shape = 'u8[65536]{0}', space=vmem, size = 0x10000, scoped, tag = 'input window, operand 0, single buffered']
    #allocation3 [shape = 's32[1]{0}', space=sflag, size = 0x4, scoped, tag = 'scoped memory for tpu_custom_call.1']
    #allocation4 [shape = 's32[1]{0}', space=sflag, size = 0x4, scoped, tag = 'scoped memory for tpu_custom_call.1']
    #allocation5 [shape = 'u8[65536]{0}', space=vmem, size = 0x10000, scoped, tag = 'input window, operand 1, single buffered']
    #allocation6 [shape = 's32[1]{0}', space=sflag, size = 0x4, scoped, tag = 'scoped memory for tpu_custom_call.1']
    #allocation7 [shape = 'u8[65536]{0}', space=vmem, size = 0x10000, scoped, tag = 'output window, operand 0, single buffered']
    %7 = vsyncpa [#allocation3], 0
    %8 = vsyncpa [#allocation6], 0
    %9 = vsyncpa [#allocation4], 0
    // Predicated region
    $region2: #{tpu_custom_call.1} parent=1 // pred_check
      _
    $region3: #{tpu_custom_call.1} parent=1 // pred_check_branch
      %11 = sbr.rel (0) target = $region5
    $region4: #{tpu_custom_call.1} parent=1 // pred_region
      %s13 = ssub.s32 2048, 2048
      %14 = vsyncadd [#allocation3], %s13
      %s15 = sshll.u32 [#allocation2], 4
      %s16 = int_to_ptr.vmem [resolvable:$true] %s15
      %21 = dma.hbm_to_vmem [thread:$0]  %s0, 2048, %s16, [#allocation3], 128, 128, 8
    $region5: #{tpu_custom_call.1} parent=1 // pred_fallthru
      _
    // Predicated region
    $region6: #{tpu_custom_call.1} parent=1 // pred_check
      _
    $region7: #{tpu_custom_call.1} parent=1 // pred_check_branch
      %23 = sbr.rel (0) target = $region9
    $region8: #{tpu_custom_call.1} parent=1 // pred_region
      %s25 = ssub.s32 2048, 2048
      %26 = vsyncadd [#allocation6], %s25
      %s27 = sshll.u32 [#allocation5], 4
      %s28 = int_to_ptr.vmem [resolvable:$true] %s27
      %33 = dma.hbm_to_vmem [thread:$0]  %s1, 2048, %s28, [#allocation6], 128, 128, 8
    $region9: #{tpu_custom_call.1} parent=1 // pred_fallthru
      _
    // Predicated region
    $region10: #{tpu_custom_call.1} parent=1 // pred_check
      _
    $region11: #{tpu_custom_call.1} parent=1 // pred_check_branch
      %35 = sbr.rel (0) target = $region13
    $region12: #{tpu_custom_call.1} parent=1 // pred_region
      %36 = dma.done [#allocation3], 2048
    $region13: #{tpu_custom_call.1} parent=1 // pred_fallthru
      _
    // Predicated region
    $region14: #{tpu_custom_call.1} parent=1 // pred_check
      _
    $region15: #{tpu_custom_call.1} parent=1 // pred_check_branch
      %38 = sbr.rel (0) target = $region17
    $region16: #{tpu_custom_call.1} parent=1 // pred_region
      %39 = dma.done [#allocation6], 2048
    $region17: #{tpu_custom_call.1} parent=1 // pred_fallthru
      _
    %v40 = vld [vmem:[#allocation2] sm:$0xff]
    %v41 = vld [vmem:[#allocation2 + $0x8] sm:$0xff]
    %v42 = vld [vmem:[#allocation2 + $0x10] sm:$0xff]
    %v43 = vld [vmem:[#allocation2 + $0x18] sm:$0xff]
    %v44 = vld [vmem:[#allocation2 + $0x20] sm:$0xff]
    %v45 = vld [vmem:[#allocation2 + $0x28] sm:$0xff]
    %v46 = vld [vmem:[#allocation2 + $0x30] sm:$0xff]
    %v47 = vld [vmem:[#allocation2 + $0x38] sm:$0xff]
    %v48 = vld [vmem:[#allocation2 + $0x40] sm:$0xff]
    %v49 = vld [vmem:[#allocation2 + $0x48] sm:$0xff]
    %v50 = vld [vmem:[#allocation2 + $0x50] sm:$0xff]
    %v51 = vld [vmem:[#allocation2 + $0x58] sm:$0xff]
    %v52 = vld [vmem:[#allocation2 + $0x60] sm:$0xff]
    %v53 = vld [vmem:[#allocation2 + $0x68] sm:$0xff]
    %v54 = vld [vmem:[#allocation2 + $0x70] sm:$0xff]
    %v55 = vld [vmem:[#allocation2 + $0x78] sm:$0xff]
    %v56 = vld [vmem:[#allocation5] sm:$0xff]
    %v57 = vld [vmem:[#allocation5 + $0x8] sm:$0xff]
    %v58 = vld [vmem:[#allocation5 + $0x10] sm:$0xff]
    %v59 = vld [vmem:[#allocation5 + $0x18] sm:$0xff]
    %v60 = vld [vmem:[#allocation5 + $0x20] sm:$0xff]
    %v61 = vld [vmem:[#allocation5 + $0x28] sm:$0xff]
    %v62 = vld [vmem:[#allocation5 + $0x30] sm:$0xff]
    %v63 = vld [vmem:[#allocation5 + $0x38] sm:$0xff]
    %v64 = vld [vmem:[#allocation5 + $0x40] sm:$0xff]
    %v65 = vld [vmem:[#allocation5 + $0x48] sm:$0xff]
    %v66 = vld [vmem:[#allocation5 + $0x50] sm:$0xff]
    %v67 = vld [vmem:[#allocation5 + $0x58] sm:$0xff]
    %v68 = vld [vmem:[#allocation5 + $0x60] sm:$0xff]
    %v69 = vld [vmem:[#allocation5 + $0x68] sm:$0xff]
    %v70 = vld [vmem:[#allocation5 + $0x70] sm:$0xff]
    %v71 = vld [vmem:[#allocation5 + $0x78] sm:$0xff]
    %v72 = vmul.f32 %v56, 0.5
    %v73 = vmul.f32 %v57, 0.5
    %v74 = vmul.f32 %v58, 0.5
    %v75 = vmul.f32 %v59, 0.5
    %v76 = vmul.f32 %v60, 0.5
    %v77 = vmul.f32 %v61, 0.5
    %v78 = vmul.f32 %v62, 0.5
    %v79 = vmul.f32 %v63, 0.5
    %v80 = vmul.f32 %v64, 0.5
    %v81 = vmul.f32 %v65, 0.5
    %v82 = vmul.f32 %v66, 0.5
    %v83 = vmul.f32 %v67, 0.5
    %v84 = vmul.f32 %v68, 0.5
    %v85 = vmul.f32 %v69, 0.5
    %v86 = vmul.f32 %v70, 0.5
    %v87 = vmul.f32 %v71, 0.5
    %v88 = vtanh.pop %v72
    %v89 = vtanh.pop %v73
    %v90 = vtanh.pop %v74
    %v91 = vtanh.pop %v75
    %v92 = vtanh.pop %v76
    %v93 = vtanh.pop %v77
    %v94 = vtanh.pop %v78
    %v95 = vtanh.pop %v79
    %v96 = vtanh.pop %v80
    %v97 = vtanh.pop %v81
    %v98 = vtanh.pop %v82
    %v99 = vtanh.pop %v83
    %v100 = vtanh.pop %v84
    %v101 = vtanh.pop %v85
    %v102 = vtanh.pop %v86
    %v103 = vtanh.pop %v87
    %v104 = vadd.f32 %v88, 1.0
    %v105 = vadd.f32 %v89, 1.0
    %v106 = vadd.f32 %v90, 1.0
    %v107 = vadd.f32 %v91, 1.0
    %v108 = vadd.f32 %v92, 1.0
    %v109 = vadd.f32 %v93, 1.0
    %v110 = vadd.f32 %v94, 1.0
    %v111 = vadd.f32 %v95, 1.0
    %v112 = vadd.f32 %v96, 1.0
    %v113 = vadd.f32 %v97, 1.0
    %v114 = vadd.f32 %v98, 1.0
    %v115 = vadd.f32 %v99, 1.0
    %v116 = vadd.f32 %v100, 1.0
    %v117 = vadd.f32 %v101, 1.0
    %v118 = vadd.f32 %v102, 1.0
    %v119 = vadd.f32 %v103, 1.0
    %v120 = vmul.f32 %v104, 0.5
    %v121 = vmul.f32 %v105, 0.5
    %v122 = vmul.f32 %v106, 0.5
    %v123 = vmul.f32 %v107, 0.5
    %v124 = vmul.f32 %v108, 0.5
    %v125 = vmul.f32 %v109, 0.5
    %v126 = vmul.f32 %v110, 0.5
    %v127 = vmul.f32 %v111, 0.5
    %v128 = vmul.f32 %v112, 0.5
    %v129 = vmul.f32 %v113, 0.5
    %v130 = vmul.f32 %v114, 0.5
    %v131 = vmul.f32 %v115, 0.5
    %v132 = vmul.f32 %v116, 0.5
    %v133 = vmul.f32 %v117, 0.5
    %v134 = vmul.f32 %v118, 0.5
    %v135 = vmul.f32 %v119, 0.5
    %v136 = vtanh.pop %v40
    %v137 = vtanh.pop %v41
    %v138 = vtanh.pop %v42
    %v139 = vtanh.pop %v43
    %v140 = vtanh.pop %v44
    %v141 = vtanh.pop %v45
    %v142 = vtanh.pop %v46
    %v143 = vtanh.pop %v47
    %v144 = vtanh.pop %v48
    %v145 = vtanh.pop %v49
    %v146 = vtanh.pop %v50
    %v147 = vtanh.pop %v51
    %v148 = vtanh.pop %v52
    %v149 = vtanh.pop %v53
    %v150 = vtanh.pop %v54
    %v151 = vtanh.pop %v55
    %v152 = vmul.f32 %v136, %v120
    %v153 = vmul.f32 %v137, %v121
    %v154 = vmul.f32 %v138, %v122
    %v155 = vmul.f32 %v139, %v123
    %v156 = vmul.f32 %v140, %v124
    %v157 = vmul.f32 %v141, %v125
    %v158 = vmul.f32 %v142, %v126
    %v159 = vmul.f32 %v143, %v127
    %v160 = vmul.f32 %v144, %v128
    %v161 = vmul.f32 %v145, %v129
    %v162 = vmul.f32 %v146, %v130
    %v163 = vmul.f32 %v147, %v131
    %v164 = vmul.f32 %v148, %v132
    %v165 = vmul.f32 %v149, %v133
    %v166 = vmul.f32 %v150, %v134
    %v167 = vmul.f32 %v151, %v135
    %168 = vst [vmem:[#allocation7] sm:$0xff] %v152
    %169 = vst [vmem:[#allocation7 + $0x8] sm:$0xff] %v153
    %170 = vst [vmem:[#allocation7 + $0x10] sm:$0xff] %v154
    %171 = vst [vmem:[#allocation7 + $0x18] sm:$0xff] %v155
    %172 = vst [vmem:[#allocation7 + $0x20] sm:$0xff] %v156
    %173 = vst [vmem:[#allocation7 + $0x28] sm:$0xff] %v157
    %174 = vst [vmem:[#allocation7 + $0x30] sm:$0xff] %v158
    %175 = vst [vmem:[#allocation7 + $0x38] sm:$0xff] %v159
    %176 = vst [vmem:[#allocation7 + $0x40] sm:$0xff] %v160
    %177 = vst [vmem:[#allocation7 + $0x48] sm:$0xff] %v161
    %178 = vst [vmem:[#allocation7 + $0x50] sm:$0xff] %v162
    %179 = vst [vmem:[#allocation7 + $0x58] sm:$0xff] %v163
    %180 = vst [vmem:[#allocation7 + $0x60] sm:$0xff] %v164
    %181 = vst [vmem:[#allocation7 + $0x68] sm:$0xff] %v165
    %182 = vst [vmem:[#allocation7 + $0x70] sm:$0xff] %v166
    %183 = vst [vmem:[#allocation7 + $0x78] sm:$0xff] %v167
    // Predicated region
    $region18: #{tpu_custom_call.1} parent=1 // pred_check
      _
    $region19: #{tpu_custom_call.1} parent=1 // pred_check_branch
      %185 = sbr.rel (0) target = $region21
    $region20: #{tpu_custom_call.1} parent=1 // pred_region
      %s187 = ssub.s32 2048, 2048
      %188 = vsyncadd [#allocation4], %s187
      %s189 = sshll.u32 [#allocation7], 4
      %s190 = int_to_ptr.vmem [resolvable:$true] %s189
      %195 = dma.vmem_to_hbm [thread:$0]  %s190, 2048, %s2, [#allocation4], 128, 128, 8
    $region21: #{tpu_custom_call.1} parent=1 // pred_fallthru
      _
    // Predicated region
    $region22: #{tpu_custom_call.1} parent=1 // pred_check
      _
    $region23: #{tpu_custom_call.1} parent=1 // pred_check_branch
      %197 = sbr.rel (0) target = $region25
    $region24: #{tpu_custom_call.1} parent=1 // pred_region
      %198 = dma.done [#allocation4], 2048
    $region25: #{tpu_custom_call.1} parent=1 // pred_fallthru
      _
    %199 = vsyncpa [#allocation3], 1
    %200 = vsyncpa [#allocation6], 1
    %201 = vsyncpa [#allocation4], 1

</llo_original>
